<compile_context>
chip_gen: v7x
topology: tpu7x:2x2x1
jax: 0.10.0
libtpu: 0.0.40
codegen_flags: <defaults>
</compile_context>

<pallas_src>
import functools

import jax
import jax.numpy as jnp
from jax.experimental import pallas as pl
from jax.experimental.pallas import tpu as pltpu


def _round_up(x, m):
    return ((x + m - 1) // m) * m


def _ltloss_kernel(feat_ref, means_t_ref, labels_ref, const_ref,
                   logit_ref, closs_ref, *,
                   alpha, has_labels, batch_size, tile_b):
    feat = feat_ref[...].astype(jnp.float32)              # (TB, D)
    means_t = means_t_ref[...]                             # (D, C_pad), pre-normalized (f32 or bf16)
    TB = feat.shape[0]
    C = means_t.shape[1]

    const = const_ref[...]                                 # (8, C_pad) f32, packed per-class rows
    inv_fd = const[0:1, :]                                 # 1 / freedom_degrees
    expc = const[1:2, :]                                   # (fd + log D) / 2
    ratio = const[2:3, :]                                  # c_up / c_down (0 on pad classes)
    yy = const[3:4, :]                                     # ||means_n||^2

    # F.normalize(feat, dim=1):  x * min(rsqrt(ss), 1e12) == x / max(||x||, 1e-12)
    ss_f = jnp.sum(feat * feat, axis=1, keepdims=True)     # (TB, 1)
    inv_f = jnp.minimum(jax.lax.rsqrt(ss_f), 1e12)
    feat_n = feat * inv_f
    XX = ss_f * (inv_f * inv_f)                            # ||feat_n||^2 (==1 except degenerate rows)

    # feat_n @ means_n.T with means pre-transposed to (D, C_pad): plain MXU matmul,
    # K on sublanes / classes on lanes -> no in-kernel transpose.  Optional bf16 operands.
    XY = jnp.dot(feat_n.astype(means_t.dtype), means_t,
                 preferred_element_type=jnp.float32)       # (TB, C_pad)
    real_neg_sqr_dist = XX - 2.0 * XY + yy                 # (TB, C_pad)

    # (1, C_pad) lane iota; broadcast against (TB, 1) labels/indices, never
    # materialized as a (TB, C_pad) int32 tensor in the labeled path.
    col = jax.lax.broadcasted_iota(jnp.int32, (1, C), 1)
    if has_labels:
        lbl = labels_ref[...]                              # (TB, 1) i32
        oh = (col == lbl).astype(jnp.float32)              # one-hot (scatter_ + ones)
        sqr_dist = (1.0 + alpha * oh) * real_neg_sqr_dist
    else:
        sqr_dist = real_neg_sqr_dist

    neg_sqr_dist = 1.0 + sqr_dist * inv_fd
    # (x + 1e-8) ** (-exp)  ==  exp(-exp * log(x + 1e-8))   (EUP transcendentals)
    all_neg = jnp.exp(-expc * jnp.log(neg_sqr_dist + 1e-8))
    logit_raw = ratio * all_neg                            # pad classes: ratio == 0 -> logit 0
    ss_l = jnp.sum(logit_raw * logit_raw, axis=1, keepdims=True)
    logit = logit_raw * jnp.minimum(jax.lax.rsqrt(ss_l), 1e12)
    logit_ref[...] = logit
    # TODO(synk): emit logit as bf16 to halve the dominant HBM writeback once the
    # downstream consumer tolerates ~2e-3 relative error.

    # Center loss: ||feat_n - means_n[sel]||^2 is exactly the selected entry of
    # real_neg_sqr_dist -> no second matmul, no (TB, D) temporary.
    if has_labels:
        oh_sel = oh
    else:
        # pseudo labels = argmax(logit, dim=1), first-occurrence tie-break.
        max_v = jnp.max(logit, axis=1, keepdims=True)
        idx = jnp.min(jnp.where(logit == max_v, col, C), axis=1, keepdims=True)
        oh_sel = (col == idx).astype(jnp.float32)

    row = jax.lax.broadcasted_iota(jnp.int32, (TB, 1), 0) + pl.program_id(0) * tile_b
    valid = (row < batch_size).astype(jnp.float32)         # mask batch-padding rows
    # Per-row partials (tile-independent -> safe under the "parallel" batch axis);
    # <1% of the logit output bytes, so a per-tile scalar store isn't worth the risk.
    closs_ref[...] = jnp.sum(oh_sel * real_neg_sqr_dist, axis=1, keepdims=True) * valid


def _vmem_budget_bytes():
    """Generation-aware scoped-VMEM budget for this kernel."""
    phys = 64 << 20            # conservative default: v7x has 64 MiB per TensorCore
    try:
        v = int(pltpu.get_tpu_info().vmem_capacity_bytes)
        if v > 0:
            phys = v
    except Exception:          # hardware query unavailable (e.g. interpret mode)
        pass
    # ~70% of physical leaves headroom for compiler-internal scratch; cap the
    # raise so 128-MiB parts (v5e/v6e) get ~90 MiB, v7x lands at ~45 MiB.
    return min(int(phys * 0.70), 96 << 20)


def _pick_tile_b(B, D, C_pad, budget_bytes, means_itemsize):
    """VMEM-honest batch-tile size with a megacore-friendly grid cap."""
    fixed = (2 * C_pad * D * means_itemsize      # resident means (double-buffered)
             + 2 * 8 * C_pad * 4                 # packed per-class constant rows
             + (1 << 20))                        # compiler-internal slack
    per_row = 4 * (2 * D + 2 * C_pad             # feat / logit double buffers
                   + 8 * C_pad + 2 * D           # live in-body f32 temporaries
                   + 4)                          # labels + closs blocks
    avail = max(budget_bytes - fixed, 8 * per_row)
    tb = max(8, min(avail // per_row, 2048))
    tb = (tb // 8) * 8
    # Keep >= min(4, ceil(B/8)) grid steps so the parallel axis can shard across
    # v7x's 2 TensorCores (and the pipeline has something to overlap).
    min_tiles = min(4, max(1, -(-B // 8)))
    tb_cap = max(8, ((-(-B // min_tiles)) + 7) // 8 * 8)
    tb = min(tb, tb_cap, _round_up(B, 8))
    return max(8, tb)


def lt_loss_forward(feat, means, raw_freedom_degrees, labels=None,
                    alpha=0.1, lambda_=0.01, matmul_dtype=jnp.float32):
    """Returns (logit, center_loss, normalized_means, alpha, lambda_)."""
    B, D = feat.shape
    C = means.shape[0]

    means_f32 = means.astype(jnp.float32)
    means_n = means_f32 / jnp.maximum(
        jnp.sqrt(jnp.sum(means_f32 * means_f32, axis=1, keepdims=True)), 1e-12)

    # Per-class constants (parameter-only, tiny) -> plain-JAX glue (lgamma has no
    # in-kernel equivalent).
    fd = jnp.squeeze(raw_freedom_degrees, axis=1).astype(jnp.float32) ** 2 + 0.1
    logD = jnp.log(jnp.float32(D))
    expc = (fd + logD) / 2.0
    c_up = jnp.exp(jax.lax.lgamma(jnp.maximum(expc, 1e-8)))
    c_down = (jnp.exp(jax.lax.lgamma(jnp.maximum(fd / 2.0, 1e-8)))
              * jnp.power(fd, logD / 2.0))
    ratio = c_up / c_down
    inv_fd = 1.0 / fd
    yy = jnp.sum(means_n * means_n, axis=1)                # ==1 except degenerate rows

    # Pad class dim to a lane-dense multiple of 128; pad classes are inert.
    C_pad = _round_up(max(C, 128), 128)
    pc = C_pad - C
    # Resident operands: means pre-transposed once to (D, C_pad) (MXU-friendly
    # RHS layout), per-class constants packed into one sublane-aligned block.
    means_t = jnp.pad(means_n, ((0, pc), (0, 0))).T.astype(matmul_dtype)   # (D, C_pad)
    const_rows = jnp.pad(
        jnp.stack([
            jnp.pad(inv_fd, (0, pc), constant_values=1.0),
            jnp.pad(expc, (0, pc), constant_values=1.0),
            jnp.pad(ratio, (0, pc)),          # pad classes -> ratio 0 -> logit 0
            jnp.pad(yy, (0, pc)),
        ]), ((0, 4), (0, 0)))                 # (8, C_pad)

    # Batch tiling (pipelined feat DMA; VMEM-honest, generation-aware tile size).
    # TODO(synk): feat_dim D is not padded to a lane multiple; MXU contraction is
    # under-filled for D < 128 but padding feat would add wrapper HBM traffic.
    budget = _vmem_budget_bytes()
    TB = _pick_tile_b(B, D, C_pad, budget, jnp.dtype(matmul_dtype).itemsize)
    B_pad = _round_up(B, TB)
    feat_p = jnp.pad(feat, ((0, B_pad - B), (0, 0)))

    has_labels = labels is not None
    if has_labels:
        lbl_p = jnp.pad(labels.reshape(B, 1).astype(jnp.int32),
                        ((0, B_pad - B), (0, 0)))
    else:
        lbl_p = jnp.zeros((B_pad, 1), jnp.int32)           # dummy; unused branch

    kernel = functools.partial(_ltloss_kernel, alpha=float(alpha),
                               has_labels=has_labels, batch_size=B, tile_b=TB)

    logit_p, closs_rows = pl.pallas_call(
        kernel,
        grid=(B_pad // TB,),
        in_specs=[
            pl.BlockSpec((TB, D), lambda i: (i, 0)),        # feat tile (pipelined)
            pl.BlockSpec((D, C_pad), lambda i: (0, 0)),     # normalized means^T (resident)
            pl.BlockSpec((TB, 1), lambda i: (i, 0)),        # labels tile
            pl.BlockSpec((8, C_pad), lambda i: (0, 0)),     # packed per-class constant rows
        ],
        out_specs=[
            pl.BlockSpec((TB, C_pad), lambda i: (i, 0)),    # logit (lane-dense)
            pl.BlockSpec((TB, 1), lambda i: (i, 0)),        # per-row center-loss partial
        ],
        out_shape=[
            jax.ShapeDtypeStruct((B_pad, C_pad), jnp.float32),
            jax.ShapeDtypeStruct((B_pad, 1), jnp.float32),
        ],
        compiler_params=pltpu.CompilerParams(
            dimension_semantics=("parallel",),
            vmem_limit_bytes=int(budget)),
    )(feat_p, means_t, lbl_p, const_rows)

    logit = logit_p[:B, :C]
    center_loss = lambda_ * (jnp.sum(closs_rows[:B, 0]) / 2.0) * (1.0 / B)
    return logit, center_loss, means_n, alpha, lambda_


def _reference(feat, means, raw_fd, labels=None, alpha=0.1, lambda_=0.01):
    """Pure-JAX port of the PyTorch forward, for correctness checking."""
    feat = feat.astype(jnp.float32)
    means = means.astype(jnp.float32)
    B, D = feat.shape
    C = means.shape[0]
    feat_n = feat / jnp.maximum(
        jnp.sqrt(jnp.sum(feat * feat, axis=1, keepdims=True)), 1e-12)
    means_n = means / jnp.maximum(
        jnp.sqrt(jnp.sum(means * means, axis=1, keepdims=True)), 1e-12)
    fd = jnp.squeeze(raw_fd, axis=1) ** 2 + 0.1
    logD = jnp.log(jnp.float32(D))
    XY = feat_n @ means_n.T
    XX = jnp.sum(feat_n ** 2, axis=1, keepdims=True)
    YY = jnp.sum(means_n ** 2, axis=1).reshape(1, C)
    real = XX - 2.0 * XY + YY
    if labels is None:
        sqr = real
    else:
        oh = jax.nn.one_hot(labels, C, dtype=jnp.float32)
        sqr = (1.0 + alpha * oh) * real
    expc = (fd + logD) / 2.0
    neg = 1.0 + sqr / fd
    allneg = (neg + 1e-8) ** (-expc)
    c_up = jnp.exp(jax.lax.lgamma(jnp.maximum(expc, 1e-8)))
    c_down = jnp.exp(jax.lax.lgamma(jnp.maximum(fd / 2.0, 1e-8))) * fd ** (logD / 2.0)
    logit = c_up / c_down * allneg
    logit = logit / jnp.maximum(
        jnp.sqrt(jnp.sum(logit * logit, axis=1, keepdims=True)), 1e-12)
    sel = jnp.argmax(logit, axis=1) if labels is None else labels
    mb = means_n[sel]
    closs = lambda_ * (jnp.sum((feat_n - mb) ** 2) / 2.0) * (1.0 / B)
    return logit, closs


if __name__ == "__main__":
    key = jax.random.PRNGKey(0)
    B, C, D = 8, 16, 32   # batch, num_classes, feat_dim

    k_means, k_fd, k_feat, k_lbl = jax.random.split(key, 4)

    # Deterministic xavier_uniform-style init (matches nn.init.xavier_uniform_ bounds).
    bound_means = (6.0 / (C + D)) ** 0.5
    means = jax.random.uniform(k_means, (C, D), jnp.float32,
                               -bound_means, bound_means)
    bound_fd = (6.0 / (C + 1)) ** 0.5
    raw_fd = jax.random.uniform(k_fd, (C, 1), jnp.float32, -bound_fd, bound_fd)

    feat = jax.random.normal(k_feat, (B, D), jnp.float32)
    labels = jax.random.randint(k_lbl, (B,), 0, C)

    # Labeled path (f32 MXU).
    logit, closs, means_n, a, l = lt_loss_forward(feat, means, raw_fd, labels,
                                                  alpha=0.1, lambda_=0.01)
    jax.block_until_ready((logit, closs, means_n))

    # Unlabeled path (pseudo-labels via in-kernel argmax).
    logit_u, closs_u, *_ = lt_loss_forward(feat, means, raw_fd, None,
                                           alpha=0.1, lambda_=0.01)
    jax.block_until_ready((logit_u, closs_u))

    assert logit.shape == (B, C) and logit_u.shape == (B, C)
    assert bool(jnp.all(jnp.isfinite(logit))) and bool(jnp.isfinite(closs))
    assert bool(jnp.all(jnp.isfinite(logit_u))) and bool(jnp.isfinite(closs_u))

    # Correctness vs. pure-JAX reference of the PyTorch forward.
    ref_logit, ref_closs = _reference(feat, means, raw_fd, labels, 0.1, 0.01)
    ref_logit_u, ref_closs_u = _reference(feat, means, raw_fd, None, 0.1, 0.01)
    assert bool(jnp.allclose(logit, ref_logit, rtol=2e-3, atol=1e-5))
    assert bool(jnp.allclose(closs, ref_closs, rtol=2e-3, atol=1e-6))
    assert bool(jnp.allclose(logit_u, ref_logit_u, rtol=2e-3, atol=1e-5))
    assert bool(jnp.allclose(closs_u, ref_closs_u, rtol=2e-3, atol=1e-6))

    # Optional bf16 MXU path: halves the resident means VMEM/DMA and runs the
    # matmul at the native MXU rate; validated at a bf16-appropriate tolerance.
    logit_bf, closs_bf, *_ = lt_loss_forward(feat, means, raw_fd, labels,
                                             alpha=0.1, lambda_=0.01,
                                             matmul_dtype=jnp.bfloat16)
    jax.block_until_ready((logit_bf, closs_bf))
    assert bool(jnp.all(jnp.isfinite(logit_bf))) and bool(jnp.isfinite(closs_bf))
    assert bool(jnp.allclose(logit_bf, ref_logit, rtol=5e-2, atol=1e-3))
    assert bool(jnp.allclose(closs_bf, ref_closs, rtol=5e-2, atol=1e-3))

    print("KERNEL_OK")
</pallas_src>

<mosaic_0001>
module attributes {stable_mosaic.version = 11 : i64} {
  func.func @_ltloss_kernel(%arg0: i32, %arg1: memref<8x32xf32, #tpu.memory_space<vmem>>, %arg2: memref<32x128xf32, #tpu.memory_space<vmem>>, %arg3: memref<8x1xi32, #tpu.memory_space<vmem>>, %arg4: memref<8x128xf32, #tpu.memory_space<vmem>>, %arg5: memref<8x128xf32, #tpu.memory_space<vmem>>, %arg6: memref<8x1xf32, #tpu.memory_space<vmem>>) attributes {dimension_semantics = [#tpu.dimension_semantics<parallel>], iteration_bounds = array<i64: 1>, scalar_prefetch = 0 : i64, scratch_operands = 0 : i64, tpu.core_type = #tpu.core_type<tc>, window_params = [{transform_indices = @transform_0, window_bounds = array<i64: 8, 32>}, {pipeline_mode = #tpu.pipeline_mode<synchronous>, transform_indices = @transform_1, window_bounds = array<i64: 32, 128>}, {transform_indices = @transform_2, window_bounds = array<i64: 8, 1>}, {pipeline_mode = #tpu.pipeline_mode<synchronous>, transform_indices = @transform_3, window_bounds = array<i64: 8, 128>}, {transform_indices = @transform_4, window_bounds = array<i64: 8, 128>}, {transform_indices = @transform_5, window_bounds = array<i64: 8, 1>}]} {
    %c0 = arith.constant 0 : index
    %c0_0 = arith.constant 0 : index
    %0 = vector.load %arg1[%c0, %c0_0] : memref<8x32xf32, #tpu.memory_space<vmem>>, vector<8x32xf32>
    %c0_1 = arith.constant 0 : index
    %c0_2 = arith.constant 0 : index
    %1 = vector.load %arg2[%c0_1, %c0_2] : memref<32x128xf32, #tpu.memory_space<vmem>>, vector<32x128xf32>
    %c0_3 = arith.constant 0 : index
    %c0_4 = arith.constant 0 : index
    %2 = vector.load %arg4[%c0_3, %c0_4] : memref<8x128xf32, #tpu.memory_space<vmem>>, vector<8x128xf32>
    %3 = vector.extract_strided_slice %2 {offsets = [0, 0], sizes = [1, 128], strides = [1, 1]} : vector<8x128xf32> to vector<1x128xf32>
    %4 = vector.extract_strided_slice %2 {offsets = [1, 0], sizes = [1, 128], strides = [1, 1]} : vector<8x128xf32> to vector<1x128xf32>
    %5 = vector.extract_strided_slice %2 {offsets = [2, 0], sizes = [1, 128], strides = [1, 1]} : vector<8x128xf32> to vector<1x128xf32>
    %6 = vector.extract_strided_slice %2 {offsets = [3, 0], sizes = [1, 128], strides = [1, 1]} : vector<8x128xf32> to vector<1x128xf32>
    %7 = arith.mulf %0, %0 : vector<8x32xf32>
    %cst = arith.constant dense<0.000000e+00> : vector<8xf32>
    %8 = vector.multi_reduction <add>, %7, %cst [1] : vector<8x32xf32> to vector<8xf32>
    %9 = vector.shape_cast %8 : vector<8xf32> to vector<8x1xf32>
    %10 = math.rsqrt %9 : vector<8x1xf32>
    %cst_5 = arith.constant 9.99999995E+11 : f32
    %11 = vector.broadcast %cst_5 : f32 to vector<8x1xf32>
    %12 = arith.minimumf %10, %11 : vector<8x1xf32>
    %13 = vector.broadcast %12 : vector<8x1xf32> to vector<8x32xf32>
    %14 = arith.mulf %0, %13 : vector<8x32xf32>
    %15 = arith.mulf %12, %12 : vector<8x1xf32>
    %16 = arith.mulf %9, %15 : vector<8x1xf32>
    %cst_6 = arith.constant dense<0.000000e+00> : vector<8x128xf32>
    %17 = tpu.matmul %14, %1, %cst_6 {dimension_numbers = #tpu.dot_dimension_numbers<[1], [0], [0], [1], [0, 0, 1, 1], [], []>} : vector<8x32xf32>, vector<32x128xf32>, vector<8x128xf32> -> vector<8x128xf32>
    %cst_7 = arith.constant 2.000000e+00 : f32
    %18 = vector.broadcast %cst_7 : f32 to vector<8x128xf32>
    %19 = arith.mulf %18, %17 : vector<8x128xf32>
    %20 = vector.broadcast %16 : vector<8x1xf32> to vector<8x128xf32>
    %21 = arith.subf %20, %19 : vector<8x128xf32>
    %22 = vector.broadcast %6 : vector<1x128xf32> to vector<8x128xf32>
    %23 = arith.addf %21, %22 : vector<8x128xf32>
    %24 = tpu.iota {dimensions = array<i32: 1>} : vector<1x128xi32>
    %c0_8 = arith.constant 0 : index
    %c0_9 = arith.constant 0 : index
    %25 = vector.load %arg3[%c0_8, %c0_9] : memref<8x1xi32, #tpu.memory_space<vmem>>, vector<8x1xi32>
    %26 = vector.broadcast %24 : vector<1x128xi32> to vector<8x128xi32>
    %27 = vector.broadcast %25 : vector<8x1xi32> to vector<8x128xi32>
    %28 = arith.cmpi eq, %26, %27 : vector<8x128xi32>
    %29 = arith.extui %28 : vector<8x128xi1> to vector<8x128xi32>
    %30 = arith.sitofp %29 : vector<8x128xi32> to vector<8x128xf32>
    %cst_10 = arith.constant 1.000000e-01 : f32
    %31 = vector.broadcast %cst_10 : f32 to vector<8x128xf32>
    %32 = arith.mulf %31, %30 : vector<8x128xf32>
    %cst_11 = arith.constant 1.000000e+00 : f32
    %33 = vector.broadcast %cst_11 : f32 to vector<8x128xf32>
    %34 = arith.addf %33, %32 : vector<8x128xf32>
    %35 = arith.mulf %34, %23 : vector<8x128xf32>
    %36 = vector.broadcast %3 : vector<1x128xf32> to vector<8x128xf32>
    %37 = arith.mulf %35, %36 : vector<8x128xf32>
    %cst_12 = arith.constant 1.000000e+00 : f32
    %38 = vector.broadcast %cst_12 : f32 to vector<8x128xf32>
    %39 = arith.addf %38, %37 : vector<8x128xf32>
    %cst_13 = arith.constant 0.000000e+00 : f32
    %40 = vector.broadcast %cst_13 : f32 to vector<1x128xf32>
    %41 = arith.subf %40, %4 : vector<1x128xf32>
    %cst_14 = arith.constant 9.99999993E-9 : f32
    %42 = vector.broadcast %cst_14 : f32 to vector<8x128xf32>
    %43 = arith.addf %39, %42 : vector<8x128xf32>
    %44 = math.log %43 : vector<8x128xf32>
    %45 = vector.broadcast %41 : vector<1x128xf32> to vector<8x128xf32>
    %46 = arith.mulf %45, %44 : vector<8x128xf32>
    %47 = math.exp %46 : vector<8x128xf32>
    %48 = vector.broadcast %5 : vector<1x128xf32> to vector<8x128xf32>
    %49 = arith.mulf %48, %47 : vector<8x128xf32>
    %50 = arith.mulf %49, %49 : vector<8x128xf32>
    %cst_15 = arith.constant dense<0.000000e+00> : vector<8xf32>
    %51 = vector.multi_reduction <add>, %50, %cst_15 [1] : vector<8x128xf32> to vector<8xf32>
    %52 = vector.shape_cast %51 : vector<8xf32> to vector<8x1xf32>
    %53 = math.rsqrt %52 : vector<8x1xf32>
    %cst_16 = arith.constant 9.99999995E+11 : f32
    %54 = vector.broadcast %cst_16 : f32 to vector<8x1xf32>
    %55 = arith.minimumf %53, %54 : vector<8x1xf32>
    %56 = vector.broadcast %55 : vector<8x1xf32> to vector<8x128xf32>
    %57 = arith.mulf %49, %56 : vector<8x128xf32>
    %c0_17 = arith.constant 0 : index
    %c0_18 = arith.constant 0 : index
    %58 = vector.load %arg5[%c0_17, %c0_18] : memref<8x128xf32, #tpu.memory_space<vmem>>, vector<8x128xf32>
    tpu.vector_store %arg5[%c0_17, %c0_18], %57 {strides = array<i32>} : memref<8x128xf32, #tpu.memory_space<vmem>>, vector<8x128xf32>,
    %59 = tpu.iota {dimensions = array<i32: 0>} : vector<8x1xi32>
    %c8_i32 = arith.constant 8 : i32
    %60 = arith.muli %arg0, %c8_i32 : i32
    %61 = vector.broadcast %60 : i32 to vector<8x1xi32>
    %62 = arith.addi %59, %61 : vector<8x1xi32>
    %c8_i32_19 = arith.constant 8 : i32
    %63 = vector.broadcast %c8_i32_19 : i32 to vector<8x1xi32>
    %64 = arith.cmpi slt, %62, %63 : vector<8x1xi32>
    %65 = arith.extui %64 : vector<8x1xi1> to vector<8x1xi32>
    %66 = arith.sitofp %65 : vector<8x1xi32> to vector<8x1xf32>
    %67 = arith.mulf %30, %23 : vector<8x128xf32>
    %cst_20 = arith.constant dense<0.000000e+00> : vector<8xf32>
    %68 = vector.multi_reduction <add>, %67, %cst_20 [1] : vector<8x128xf32> to vector<8xf32>
    %69 = vector.shape_cast %68 : vector<8xf32> to vector<8x1xf32>
    %70 = arith.mulf %69, %66 : vector<8x1xf32>
    %c0_21 = arith.constant 0 : index
    %c0_22 = arith.constant 0 : index
    %71 = vector.load %arg6[%c0_21, %c0_22] : memref<8x1xf32, #tpu.memory_space<vmem>>, vector<8x1xf32>
    tpu.vector_store %arg6[%c0_21, %c0_22], %70 {strides = array<i32>} : memref<8x1xf32, #tpu.memory_space<vmem>>, vector<8x1xf32>,
    return
  }
  func.func @transform_0(%arg0: i32) -> (i32, i32) {
    %c0_i32 = arith.constant 0 : i32
    %c0_i32_0 = arith.constant 0 : i32
    return %arg0, %c0_i32 : i32, i32
  }
  func.func @transform_1(%arg0: i32) -> (i32, i32) {
    %c0_i32 = arith.constant 0 : i32
    %c0_i32_0 = arith.constant 0 : i32
    %c0_i32_1 = arith.constant 0 : i32
    return %c0_i32, %c0_i32_0 : i32, i32
  }
  func.func @transform_2(%arg0: i32) -> (i32, i32) {
    %c0_i32 = arith.constant 0 : i32
    %c0_i32_0 = arith.constant 0 : i32
    return %arg0, %c0_i32 : i32, i32
  }
  func.func @transform_3(%arg0: i32) -> (i32, i32) {
    %c0_i32 = arith.constant 0 : i32
    %c0_i32_0 = arith.constant 0 : i32
    %c0_i32_1 = arith.constant 0 : i32
    return %c0_i32, %c0_i32_0 : i32, i32
  }
  func.func @transform_4(%arg0: i32) -> (i32, i32) {
    %c0_i32 = arith.constant 0 : i32
    %c0_i32_0 = arith.constant 0 : i32
    return %arg0, %c0_i32 : i32, i32
  }
  func.func @transform_5(%arg0: i32) -> (i32, i32) {
    %c0_i32 = arith.constant 0 : i32
    %c0_i32_0 = arith.constant 0 : i32
    return %arg0, %c0_i32 : i32, i32
  }
}

</mosaic_0001>

<llo_original>
// kernel: tpu_custom_call.1
$region0: #{tpu_custom_call.1}
  #allocation0 [shape = 'u32[]', space=smem, size = 0x4, offset = 0x4, fixed_abs, tag = 'smem constant byte address 0x4 - core index']
  #allocation1 [shape = 'u32[144,128]{1,0:T(1,128)}', space=vmem, size = 0x12000, scoped, tag = 'internal scratch']
  %s0 = inlined_call_operand.vmem [shape: f32[8,32], index: 0, kind: input, shape index: {}]
  %s1 = inlined_call_operand.hbm [shape: f32[32,128], index: 1, kind: input, shape index: {}]
  %s2 = inlined_call_operand.vmem [shape: s32[8,1], index: 2, kind: input, shape index: {}]
  %s3 = inlined_call_operand.vmem [shape: f32[8,128], index: 3, kind: input, shape index: {}]
  %s4 = inlined_call_operand.hbm [shape: f32[8,128], index: 4, kind: output, shape index: {0}]
  %s5 = inlined_call_operand.vmem [shape: f32[8,1], index: 5, kind: output, shape index: {1}]
  %6 = xla_tuple %s4, %s5
  %s7 = sld [smem:[#allocation0]]
  $region38: #{tpu_custom_call.1} parent=0
    _
  %s9 = ssub.s32 1, %s7
  %s10 = scalar_select 0, %s9, %s7
  $region1: #{tpu_custom_call.1} parent=0
    #allocation2 [shape = 'u8[16384]{0}', space=vmem, size = 0x4000, scoped, tag = 'input window, operand 1, single buffered']
    #allocation3 [shape = 's32[1]{0}', space=sflag, size = 0x4, scoped, tag = 'scoped memory for tpu_custom_call.1']
    #allocation4 [shape = 's32[1]{0}', space=sflag, size = 0x4, scoped, tag = 'scoped memory for tpu_custom_call.1']
    #allocation5 [shape = 'u8[4096]{0}', space=vmem, size = 0x1000, scoped, tag = 'output window, operand 0, single buffered']
    %11 = vsyncpa [#allocation3], 0
    %12 = vsyncpa [#allocation4], 0
    // Predicated region
    $region2: #{tpu_custom_call.1} parent=1 // pred_check
      _
    $region3: #{tpu_custom_call.1} parent=1 // pred_check_branch
      %14 = sbr.rel (0) target = $region5
    $region4: #{tpu_custom_call.1} parent=1 // pred_region
      _
    $region5: #{tpu_custom_call.1} parent=1 // pred_fallthru
      _
    // Predicated region
    $region6: #{tpu_custom_call.1} parent=1 // pred_check
      _
    $region7: #{tpu_custom_call.1} parent=1 // pred_check_branch
      %16 = sbr.rel (0) target = $region9
    $region8: #{tpu_custom_call.1} parent=1 // pred_region
      %s18 = ssub.s32 512, 512
      %19 = vsyncadd [#allocation3], %s18
      %s20 = sshll.u32 [#allocation2], 4
      %s21 = int_to_ptr.vmem [resolvable:$true] %s20
      %26 = dma.hbm_to_vmem [thread:$0]  %s1, 512, %s21, [#allocation3], 128, 128, 8
    $region9: #{tpu_custom_call.1} parent=1 // pred_fallthru
      _
    // Predicated region
    $region10: #{tpu_custom_call.1} parent=1 // pred_check
      _
    $region11: #{tpu_custom_call.1} parent=1 // pred_check_branch
      %28 = sbr.rel (0) target = $region13
    $region12: #{tpu_custom_call.1} parent=1 // pred_region
      _
    $region13: #{tpu_custom_call.1} parent=1 // pred_fallthru
      _
    // Predicated region
    $region14: #{tpu_custom_call.1} parent=1 // pred_check
      _
    $region15: #{tpu_custom_call.1} parent=1 // pred_check_branch
      %30 = sbr.rel (0) target = $region17
    $region16: #{tpu_custom_call.1} parent=1 // pred_region
      _
    $region17: #{tpu_custom_call.1} parent=1 // pred_fallthru
      _
    // Predicated region
    $region18: #{tpu_custom_call.1} parent=1 // pred_check
      _
    $region19: #{tpu_custom_call.1} parent=1 // pred_check_branch
      %32 = sbr.rel (0) target = $region21
    $region20: #{tpu_custom_call.1} parent=1 // pred_region
      %33 = dma.done [#allocation3], 512
    $region21: #{tpu_custom_call.1} parent=1 // pred_fallthru
      _
    %v34 = vld [vmem:[%s0] sm:$0xff]
    %v35 = vld [vmem:[#allocation2] sm:$0xff]
    %v36 = vld [vmem:[#allocation2 + $0x8] sm:$0xff]
    %v37 = vld [vmem:[#allocation2 + $0x10] sm:$0xff]
    %v38 = vld [vmem:[#allocation2 + $0x18] sm:$0xff]
    %v39 = vld [vmem:[%s3] sm:$0xff]
    %v40 = vmul.f32 %v34, %v34
    %vm41 = vcmask 261120
    %v42 = vsel %vm41, %v40, 0.0
    %43 = vadd.xlane.f32.xlu0 %v42
    %v44 = vpop.xlane.xlu0 %43
    %v45 = vrsqrt.pop %v44
    %v46 = vmin.f32 %v45, 1e+12
    %v47 = vmul.f32 %v34, %v46
    %v48 = vmul.f32 %v46, %v46
    %v49 = vmul.f32 %v44, %v48
    %v51 = vsel %vm41, %v47, 0
    %53 = vmatprep.subr.mxu0 0.0
    %54 = vmatpush1.msra.mxu0 %v35
    %55 = vmatprep.subr.mxu0 0.0
    %56 = vmatpush1.msra.mxu0 %v36
    %57 = vmatprep.subr.mxu0 0.0
    %58 = vmatpush1.msra.mxu0 %v37
    %59 = vmatprep.subr.mxu0 0.0
    %60 = vmatpush1.msra.mxu0 %v38
    %61 = vmatprep.subr.mxu0 0.0
    %62 = vmatpush1.msra.mxu0 0.0
    %63 = vmatprep.subr.mxu0 0.0
    %64 = vmatpush1.msra.mxu0 0.0
    %65 = vmatprep.subr.mxu0 0.0
    %66 = vmatpush1.msra.mxu0 0.0
    %67 = vmatprep.subr.mxu0 0.0
    %68 = vmatpush1.msra.mxu0 0.0
    %69 = vmatprep.subr.mxu0 0.0
    %70 = vmatpush1.msra.mxu0 0.0
    %71 = vmatprep.subr.mxu0 0.0
    %72 = vmatpush1.msra.mxu0 0.0
    %73 = vmatprep.subr.mxu0 0.0
    %74 = vmatpush1.msra.mxu0 0.0
    %75 = vmatprep.subr.mxu0 0.0
    %76 = vmatpush1.msra.mxu0 0.0
    %77 = vmatprep.subr.mxu0 0.0
    %78 = vmatpush1.msra.mxu0 0.0
    %79 = vmatprep.subr.mxu0 0.0
    %80 = vmatpush1.msra.mxu0 0.0
    %81 = vmatprep.subr.mxu0 0.0
    %82 = vmatpush1.msra.mxu0 0.0
    %83 = vmatprep.subr.mxu0 0.0
    %84 = vmatpush1.msra.mxu0 0.0
    %85 = vmatprep.subr.mxu0 0.0
    %86 = vmatpush1.msra.mxu0 0.0
    %87 = vmatprep.subr.mxu0 0.0
    %88 = vmatpush1.msra.mxu0 0.0
    %89 = vmatprep.subr.mxu0 0.0
    %90 = vmatpush1.msra.mxu0 0.0
    %91 = vmatprep.subr.mxu0 0.0
    %92 = vmatpush1.msra.mxu0 0.0
    %93 = vmatprep.subr.mxu0 0.0
    %94 = vmatpush1.msra.mxu0 0.0
    %95 = vmatprep.subr.mxu0 0.0
    %96 = vmatpush1.msra.mxu0 0.0
    %97 = vmatprep.subr.mxu0 0.0
    %98 = vmatpush1.msra.mxu0 0.0
    %99 = vmatprep.subr.mxu0 0.0
    %100 = vmatpush1.msra.mxu0 0.0
    %101 = vmatprep.subr.mxu0 0.0
    %102 = vmatpush1.msra.mxu0 0.0
    %103 = vmatprep.subr.mxu0 0.0
    %104 = vmatpush1.msra.mxu0 0.0
    %105 = vmatprep.subr.mxu0 0.0
    %106 = vmatpush1.msra.mxu0 0.0
    %107 = vmatprep.subr.mxu0 0.0
    %108 = vmatpush1.msra.mxu0 0.0
    %109 = vmatprep.subr.mxu0 0.0
    %110 = vmatpush1.msra.mxu0 0.0
    %111 = vmatprep.subr.mxu0 0.0
    %112 = vmatpush1.msra.mxu0 0.0
    %113 = vmatprep.subr.mxu0 0.0
    %114 = vmatpush1.msra.mxu0 0.0
    %115 = vmatprep.subr.mxu0 0.0
    %116 = vmatpush1.msra.mxu0 0.0
    %117 = vmatprep.mubr.f32.mxu0 0.0
    %118 = vmatmul.mubr.f32.gmra.mrb[0].mxu0 %v51
    %v119 = vpop.f32.mrb[0].mxu0
    %v120 = vadd.f32 0.0, %v119
    %v121 = vpop.f32.mrb[0].mxu0
    %122 = vdwg.mxu0
    %v123 = vmul.f32 %v120, 2.0
    %v124 = vsub.f32 %v49, %v123
    %v125 = vlaneseq
    %v126 = vshrl.u32 %v125, 7
    %v127 = vsub.s32 3, %v126
    %v128 = vrot.slane %v39, %v127
    %v129 = vadd.f32 %v124, %v128
    %v130 = vlaneseq
    %v131 = vand.u32 %v130, 127
    %v132 = vld [vmem:[%s2] sm:$0xff]
    %133 = vset.pattern.permute.xlu0 0
    %134 = vperm.xlu0 %133, %v132
    %v135 = vpop.permute.xlu0 %134
    %vm136 = vcmp.eq.s32.totalorder %v131, %v135
    %v137 = vsel %vm136, 1, 0
    %v138 = vcvt.s32.f32 %v137
    %v139 = vmul.f32 %v138, 0.1
    %v140 = vadd.f32 %v139, 1.0
    %v141 = vmul.f32 %v140, %v129
    %v142 = vlaneseq
    %v143 = vshrl.u32 %v142, 7
    %v144 = vsub.s32 0, %v143
    %v145 = vrot.slane %v39, %v144
    %v146 = vmul.f32 %v141, %v145
    %v147 = vadd.f32 %v146, 1.0
    %v148 = vsub.f32 0.0, %v39
    %v149 = vadd.f32 %v147, 1e-08
    %v150 = vlog2.pop %v149
    %v151 = vmul.f32 %v150, 0.6931472
    %v152 = vlaneseq
    %v153 = vshrl.u32 %v152, 7
    %v154 = vsub.s32 1, %v153
    %v155 = vrot.slane %v148, %v154
    %v156 = vmul.f32 %v155, %v151
    %v157 = vmul.f32 %v156, 1.442695
    %v158 = vpow.pop %v157
    %v159 = vlaneseq
    %v160 = vshrl.u32 %v159, 7
    %v161 = vsub.s32 2, %v160
    %v162 = vrot.slane %v39, %v161
    %v163 = vmul.f32 %v162, %v158
    %v164 = vmul.f32 %v163, %v163
    %165 = vadd.xlane.f32.xlu0 %v164
    %v166 = vpop.xlane.xlu0 %165
    %v167 = vrsqrt.pop %v166
    %v168 = vmin.f32 %v167, 1e+12
    %v169 = vmul.f32 %v163, %v168
    %170 = vst [vmem:[#allocation5] sm:$0xff] %v169
    %v171 = vlaneseq
    %v172 = vshrl.u32 %v171, 7
    %s173 = smul.u32 0, 8
    %v174 = vstv %s173
    %v175 = vadd.s32 %v172, %v174
    %vm176 = vcmp.lt.s32.totalorder %v175, 8
    %v177 = vsel %vm176, 1, 0
    %v178 = vcvt.s32.f32 %v177
    %v179 = vmul.f32 %v138, %v129
    %180 = vadd.xlane.f32.xlu0 %v179
    %v181 = vpop.xlane.xlu0 %180
    %v182 = vmul.f32 %v181, %v178
    %vm183 = vcmask 7168
    %184 = vst.msk [vmem:[%s5] sm:$0xff] %vm183, %v182
    // Predicated region
    $region22: #{tpu_custom_call.1} parent=1 // pred_check
      _
    $region23: #{tpu_custom_call.1} parent=1 // pred_check_branch
      %186 = sbr.rel (0) target = $region25
    $region24: #{tpu_custom_call.1} parent=1 // pred_region
      %s188 = ssub.s32 128, 128
      %189 = vsyncadd [#allocation4], %s188
      %s191 = sshll.u32 [#allocation5], 4
      %s192 = int_to_ptr.vmem [resolvable:$true] %s191
      %194 = dma.vmem_to_hbm [thread:$0]  %s192, 128, %s4, [#allocation4]
    $region25: #{tpu_custom_call.1} parent=1 // pred_fallthru
      _
    // Predicated region
    $region26: #{tpu_custom_call.1} parent=1 // pred_check
      _
    $region27: #{tpu_custom_call.1} parent=1 // pred_check_branch
      %196 = sbr.rel (0) target = $region29
    $region28: #{tpu_custom_call.1} parent=1 // pred_region
      _
    $region29: #{tpu_custom_call.1} parent=1 // pred_fallthru
      _
    // Predicated region
    $region30: #{tpu_custom_call.1} parent=1 // pred_check
      _
    $region31: #{tpu_custom_call.1} parent=1 // pred_check_branch
      %198 = sbr.rel (0) target = $region33
    $region32: #{tpu_custom_call.1} parent=1 // pred_region
      %199 = dma.done [#allocation4], 128
    $region33: #{tpu_custom_call.1} parent=1 // pred_fallthru
      _
    // Predicated region
    $region34: #{tpu_custom_call.1} parent=1 // pred_check
      _
    $region35: #{tpu_custom_call.1} parent=1 // pred_check_branch
      %201 = sbr.rel (0) target = $region37
    $region36: #{tpu_custom_call.1} parent=1 // pred_region
      _
    $region37: #{tpu_custom_call.1} parent=1 // pred_fallthru
      _
    %202 = vsyncpa [#allocation3], 1
    %203 = vsyncpa [#allocation4], 1

</llo_original>
